<compile_context>
chip_gen: v6e
topology: v6e:2x2x1
jax: 0.10.0
libtpu: 0.0.40
codegen_flags: <defaults>
</compile_context>

<pallas_src>
import functools

import jax
import jax.numpy as jnp
import numpy as np
from jax import lax
from jax.experimental import pallas as pl
from jax.experimental.pallas import tpu as pltpu


# ----------------------------------------------------------------------------
# One fused kernel per batch element: projections, mask, softmax, AV, merge.
# Everything stays resident in VMEM; all contractions run on the MXU.
# ----------------------------------------------------------------------------
def _fused_attention_kernel(len_ref, dec_ref, enc_ref, wq_ref, bq_ref,
                            wkv_ref, bkv_ref, wm_ref, bm_ref,
                            attn_ref, ctx_ref, *,
                            ts, v_dim, dim, num_head, inv_temperature):
    nh = num_head
    nhd = nh * dim
    cdim = wkv_ref.shape[1]                  # nh*(dim + v_dim): lane-aligned slab
    b = pl.program_id(0)
    seq_len = len_ref[b]                     # scalar from SMEM (scalar prefetch)

    # ---- projections: all MXU, f32 accumulation ----------------------------
    # Wq/bq are zero-padded to cdim columns so q shares the kv lane layout and
    # no sub-lane slicing is needed anywhere below. 1/temperature is folded in.
    q = jnp.tanh(jnp.dot(dec_ref[...], wq_ref[...],
                         preferred_element_type=jnp.float32) + bq_ref[...])
    q = q * jnp.float32(inv_temperature)                        # (1, cdim)

    # merged key|value projection: one MXU matmul (optionally bf16 inputs).
    kv = jnp.dot(enc_ref[...], wkv_ref[...],
                 preferred_element_type=jnp.float32)
    kv = jnp.tanh(kv + bkv_ref[...])                            # (ts, cdim) f32

    # ---- block-diagonal head selection masks (tiny VPU work) ---------------
    row = lax.broadcasted_iota(jnp.int32, (nh, cdim), 0)
    col = lax.broadcasted_iota(jnp.int32, (nh, cdim), 1)
    ksel = jnp.logical_and(col >= row * dim, col < (row + 1) * dim)
    vsel = jnp.logical_and(col >= nhd + row * v_dim,
                           col < nhd + (row + 1) * v_dim)

    # q expanded block-diagonally over heads -> (nh, cdim)
    qblock = jnp.where(ksel, q, 0.0)

    # ---- energy: one MXU contraction over cdim for all heads at once -------
    # e[h, t] = sum_c qblock[h, c] * kv[t, c]  (== q_h . k_h per head)
    e = jnp.einsum("hc,tc->ht", qblock, kv,
                   preferred_element_type=jnp.float32)          # (nh, ts)

    # ---- mask built in-kernel from enc_len (no HBM mask tensor) ------------
    t_idx = lax.broadcasted_iota(jnp.int32, (nh, ts), 1)
    e = jnp.where(t_idx >= seq_len, -jnp.inf, e)

    # ---- masked softmax over ts (lane axis) ---------------------------------
    # NOTE: enc_len[b] == 0 yields a NaN row, same as the PyTorch reference.
    e_max = jnp.max(e, axis=-1, keepdims=True)
    p = jnp.exp(e - e_max)
    denom = jnp.sum(p, axis=-1, keepdims=True)
    # EUP approximate reciprocal + one Newton step on a (nh,1) tensor:
    # keeps the fast EUP path while restoring ~f32 accuracy.
    r = pl.reciprocal(denom, approx=True)
    r = r * (2.0 - denom * r)
    attn = p * r                                                # (nh, ts)
    attn_ref[...] = attn            # single store, already in caller layout

    # ---- value weighted-sum: one MXU matmul over ts for all heads ----------
    cfull = jnp.dot(attn, kv, preferred_element_type=jnp.float32)  # (nh, cdim)
    # select each head's own value block and collapse heads (small reduce)
    ctx_v = jnp.sum(jnp.where(vsel, cfull, 0.0), axis=0, keepdims=True)  # (1, cdim)

    # ---- merge_head folded in: one K=cdim matmul vs zero-padded Wm ----------
    ctx_ref[...] = (jnp.dot(ctx_v, wm_ref[...],
                            preferred_element_type=jnp.float32) + bm_ref[...])


# ----------------------------------------------------------------------------
# One-time parameter packing (hoisted out of the per-step forward):
#   Wk|Wv merged along the output dim, Wq/bq zero-padded to the kv width,
#   Wm zero-padded on its input dim so merge_head contracts over the full slab.
# ----------------------------------------------------------------------------
def prepare_attention_params(params, *, dim, num_head):
    f32 = jnp.float32
    q_dim = params["Wq"].shape[0]
    v_dim = params["Wv"].shape[0]
    nhd = dim * num_head
    nhv = v_dim * num_head
    cdim = nhd + nhv
    wq = jnp.concatenate([params["Wq"].astype(f32),
                          jnp.zeros((q_dim, nhv), f32)], axis=1)
    bq = jnp.concatenate([params["bq"].astype(f32),
                          jnp.zeros((nhv,), f32)]).reshape(1, cdim)
    wkv = jnp.concatenate([params["Wk"].astype(f32),
                           params["Wv"].astype(f32)], axis=1)
    bkv = jnp.concatenate([params["bk"].astype(f32),
                           params["bv"].astype(f32)]).reshape(1, cdim)
    wm = jnp.concatenate([jnp.zeros((nhd, v_dim), f32),
                          params["Wm"].astype(f32)], axis=0)
    bm = params["bm"].astype(f32).reshape(1, v_dim)
    return {"wq": wq, "bq": bq, "wkv": wkv, "bkv": bkv, "wm": wm, "bm": bm}


# ----------------------------------------------------------------------------
# Forward pass of the Attention module (mode='dot', v_proj=True).
# Returns (attn [bs, nh, ts], context [bs, v_dim]) like the PyTorch module.
# ----------------------------------------------------------------------------
@functools.partial(jax.jit,
                   static_argnames=("dim", "num_head", "temperature",
                                    "kv_dtype"))
def attention_forward(prepared, dec_state, enc_feat, enc_len, *,
                      dim, num_head, temperature, kv_dtype=jnp.float32):
    bs, ts, v_dim = enc_feat.shape
    q_dim = dec_state.shape[-1]
    nh = num_head
    nhd = nh * dim
    cdim = nhd + nh * v_dim

    lens = enc_len.astype(jnp.int32)                        # (bs,) -> SMEM
    dec3 = dec_state.astype(jnp.float32).reshape(bs, 1, q_dim)
    enc = enc_feat.astype(kv_dtype)     # bf16 on v6e/v7x halves enc_feat DMA
    wkv = prepared["wkv"].astype(kv_dtype)

    kernel = functools.partial(
        _fused_attention_kernel, ts=ts, v_dim=v_dim, dim=dim,
        num_head=nh, inv_temperature=1.0 / temperature)

    attn, ctx = pl.pallas_call(
        kernel,
        out_shape=(
            jax.ShapeDtypeStruct((bs, nh, ts), jnp.float32),   # attn (caller layout)
            jax.ShapeDtypeStruct((bs, 1, v_dim), jnp.float32), # context
        ),
        grid_spec=pltpu.PrefetchScalarGridSpec(
            num_scalar_prefetch=1,                 # enc_len -> SMEM
            grid=(bs,),
            in_specs=[
                pl.BlockSpec((None, 1, q_dim), lambda b, _: (b, 0, 0)),     # dec
                pl.BlockSpec((None, ts, v_dim), lambda b, _: (b, 0, 0)),    # enc
                pl.BlockSpec((q_dim, cdim), lambda b, _: (0, 0)),           # Wq|0
                pl.BlockSpec((1, cdim), lambda b, _: (0, 0)),               # bq|0
                pl.BlockSpec((v_dim, cdim), lambda b, _: (0, 0)),           # Wk|Wv
                pl.BlockSpec((1, cdim), lambda b, _: (0, 0)),               # bk|bv
                pl.BlockSpec((cdim, v_dim), lambda b, _: (0, 0)),           # 0|Wm
                pl.BlockSpec((1, v_dim), lambda b, _: (0, 0)),              # bm
            ],
            out_specs=(
                pl.BlockSpec((None, nh, ts), lambda b, _: (b, 0, 0)),
                pl.BlockSpec((None, 1, v_dim), lambda b, _: (b, 0, 0)),
            ),
        ),
        compiler_params=pltpu.CompilerParams(
            dimension_semantics=("parallel",)),    # v7x megacore over batch
    )(lens, dec3, enc, prepared["wq"], prepared["bq"], wkv, prepared["bkv"],
      prepared["wm"], prepared["bm"])

    return attn, ctx.reshape(bs, v_dim)


# ----------------------------------------------------------------------------
# Parameter construction (deterministic, mimics nn.Linear shapes; weights are
# stored as [in_features, out_features] so kernels compute x @ W + b).
# ----------------------------------------------------------------------------
def init_params(key, *, q_dim, v_dim, dim, num_head):
    ks = jax.random.split(key, 8)

    def lin(kw, kb, fan_in, fan_out):
        bound = 1.0 / np.sqrt(fan_in)
        w = jax.random.uniform(kw, (fan_in, fan_out), jnp.float32, -bound, bound)
        b = jax.random.uniform(kb, (fan_out,), jnp.float32, -bound, bound)
        return w, b

    params = {}
    params["Wq"], params["bq"] = lin(ks[0], ks[1], q_dim, dim * num_head)
    params["Wk"], params["bk"] = lin(ks[2], ks[3], v_dim, dim * num_head)
    params["Wv"], params["bv"] = lin(ks[4], ks[5], v_dim, v_dim * num_head)
    params["Wm"], params["bm"] = lin(ks[6], ks[7], v_dim * num_head, v_dim)
    return params


# ----------------------------------------------------------------------------
# Pure-JAX reference (mirrors the PyTorch semantics) for verification.
# ----------------------------------------------------------------------------
def reference_forward(params, dec_state, enc_feat, enc_len, *,
                      dim, num_head, temperature):
    bs, ts, v_dim = enc_feat.shape
    nh = num_head
    query = jnp.tanh(dec_state @ params["Wq"] + params["bq"])
    q = query.reshape(bs, nh, dim).reshape(bs * nh, dim)
    key = jnp.tanh(enc_feat @ params["Wk"] + params["bk"])
    key = key.reshape(bs, ts, nh, dim).transpose(0, 2, 1, 3).reshape(bs * nh, ts, dim)
    value = jnp.tanh(enc_feat @ params["Wv"] + params["bv"])
    value = value.reshape(bs, ts, nh, v_dim).transpose(0, 2, 1, 3).reshape(
        bs * nh, ts, v_dim)
    mask = (jnp.arange(ts)[None, :] >= enc_len[:, None])
    mask = jnp.broadcast_to(mask[:, None, :], (bs, nh, ts)).reshape(bs * nh, ts)

    energy = jnp.einsum("bd,btd->bt", q, key)
    e = energy / temperature
    e = jnp.where(mask, -jnp.inf, e)
    attn = jax.nn.softmax(e, axis=-1)
    out = jnp.einsum("bt,btv->bv", attn, value)
    attn = attn.reshape(bs, nh, ts)
    context = out.reshape(bs, nh * v_dim) @ params["Wm"] + params["bm"]
    return attn, context


if __name__ == "__main__":
    # Small config consistent with the module's forward signature.
    # NOTE: at production scale batch the decode steps so M >= 8 (ideally 128)
    # and keep ts a multiple of 128 for lane-dense attention stores.
    bs, ts = 2, 8
    v_dim, q_dim = 16, 32
    dim, num_head = 16, 4
    temperature = float(np.sqrt(dim))

    key = jax.random.PRNGKey(0)
    k_p, k_dec, k_enc = jax.random.split(key, 3)

    params = init_params(k_p, q_dim=q_dim, v_dim=v_dim, dim=dim, num_head=num_head)
    # Hoisted out of the per-step path: done exactly once.
    prepared = prepare_attention_params(params, dim=dim, num_head=num_head)

    dec_state = jax.random.normal(k_dec, (bs, q_dim), jnp.float32)
    enc_feat = jax.random.normal(k_enc, (bs, ts, v_dim), jnp.float32)
    enc_len = jnp.array([ts, 5], dtype=jnp.int32)

    # f32 K/V path (exact).
    attn, context = attention_forward(
        prepared, dec_state, enc_feat, enc_len,
        dim=dim, num_head=num_head, temperature=temperature,
        kv_dtype=jnp.float32)
    attn = jax.block_until_ready(attn)
    context = jax.block_until_ready(context)

    attn_ref, context_ref = reference_forward(
        params, dec_state, enc_feat, enc_len,
        dim=dim, num_head=num_head, temperature=temperature)

    assert attn.shape == (bs, num_head, ts)
    assert context.shape == (bs, v_dim)
    np.testing.assert_allclose(np.asarray(attn), np.asarray(attn_ref),
                               rtol=1e-3, atol=1e-3)
    np.testing.assert_allclose(np.asarray(context), np.asarray(context_ref),
                               rtol=1e-3, atol=1e-3)

    # bf16 K/V-projection path (recommended on v6e/v7x): halves enc_feat HBM
    # bytes, MXU-native inputs, f32 accumulation. Loose tolerance (bf16 inputs).
    attn_bf, ctx_bf = attention_forward(
        prepared, dec_state, enc_feat, enc_len,
        dim=dim, num_head=num_head, temperature=temperature,
        kv_dtype=jnp.bfloat16)
    ctx_bf = jax.block_until_ready(ctx_bf)
    np.testing.assert_allclose(np.asarray(attn_bf), np.asarray(attn_ref),
                               rtol=1e-1, atol=1e-1)
    np.testing.assert_allclose(np.asarray(ctx_bf), np.asarray(context_ref),
                               rtol=1e-1, atol=1e-1)

    print("KERNEL_OK")
</pallas_src>

<mosaic_0001>
module attributes {stable_mosaic.version = 11 : i64} {
  func.func @_fused_attention_kernel(%arg0: i32, %arg1: memref<2xi32, #tpu.memory_space<smem>>, %arg2: memref<1x1x32xf32, #tpu.memory_space<vmem>>, %arg3: memref<1x8x16xf32, #tpu.memory_space<vmem>>, %arg4: memref<32x128xf32, #tpu.memory_space<vmem>>, %arg5: memref<1x128xf32, #tpu.memory_space<vmem>>, %arg6: memref<16x128xf32, #tpu.memory_space<vmem>>, %arg7: memref<1x128xf32, #tpu.memory_space<vmem>>, %arg8: memref<128x16xf32, #tpu.memory_space<vmem>>, %arg9: memref<1x16xf32, #tpu.memory_space<vmem>>, %arg10: memref<1x4x8xf32, #tpu.memory_space<vmem>>, %arg11: memref<1x1x16xf32, #tpu.memory_space<vmem>>) attributes {dimension_semantics = [#tpu.dimension_semantics<parallel>], iteration_bounds = array<i64: 2>, scalar_prefetch = 1 : i64, scratch_operands = 0 : i64, tpu.core_type = #tpu.core_type<tc>, window_params = [{transform_indices = @transform_0, window_bounds = array<i64: 1, 1, 32>}, {transform_indices = @transform_1, window_bounds = array<i64: 1, 8, 16>}, {pipeline_mode = #tpu.pipeline_mode<synchronous>, transform_indices = @transform_2, window_bounds = array<i64: 32, 128>}, {pipeline_mode = #tpu.pipeline_mode<synchronous>, transform_indices = @transform_3, window_bounds = array<i64: 1, 128>}, {pipeline_mode = #tpu.pipeline_mode<synchronous>, transform_indices = @transform_4, window_bounds = array<i64: 16, 128>}, {pipeline_mode = #tpu.pipeline_mode<synchronous>, transform_indices = @transform_5, window_bounds = array<i64: 1, 128>}, {pipeline_mode = #tpu.pipeline_mode<synchronous>, transform_indices = @transform_6, window_bounds = array<i64: 128, 16>}, {pipeline_mode = #tpu.pipeline_mode<synchronous>, transform_indices = @transform_7, window_bounds = array<i64: 1, 16>}, {transform_indices = @transform_8, window_bounds = array<i64: 1, 4, 8>}, {transform_indices = @transform_9, window_bounds = array<i64: 1, 1, 16>}]} {
    %0 = arith.index_cast %arg0 : i32 to index
    %1 = memref.load %arg1[%0] : memref<2xi32, #tpu.memory_space<smem>>
    %c0 = arith.constant 0 : index
    %c0_0 = arith.constant 0 : index
    %c0_1 = arith.constant 0 : index
    %2 = vector.load %arg2[%c0, %c0_0, %c0_1] : memref<1x1x32xf32, #tpu.memory_space<vmem>>, vector<1x1x32xf32>
    %3 = vector.shape_cast %2 : vector<1x1x32xf32> to vector<1x32xf32>
    %c0_2 = arith.constant 0 : index
    %c0_3 = arith.constant 0 : index
    %4 = vector.load %arg4[%c0_2, %c0_3] : memref<32x128xf32, #tpu.memory_space<vmem>>, vector<32x128xf32>
    %cst = arith.constant dense<0.000000e+00> : vector<1x128xf32>
    %5 = tpu.matmul %3, %4, %cst {dimension_numbers = #tpu.dot_dimension_numbers<[1], [0], [0], [1], [0, 0, 1, 1], [], []>} : vector<1x32xf32>, vector<32x128xf32>, vector<1x128xf32> -> vector<1x128xf32>
    %c0_4 = arith.constant 0 : index
    %c0_5 = arith.constant 0 : index
    %6 = vector.load %arg5[%c0_4, %c0_5] : memref<1x128xf32, #tpu.memory_space<vmem>>, vector<1x128xf32>
    %7 = arith.addf %5, %6 : vector<1x128xf32>
    %8 = math.tanh %7 : vector<1x128xf32>
    %cst_6 = arith.constant 2.500000e-01 : f32
    %9 = vector.broadcast %cst_6 : f32 to vector<1x128xf32>
    %10 = arith.mulf %8, %9 : vector<1x128xf32>
    %c0_7 = arith.constant 0 : index
    %c0_8 = arith.constant 0 : index
    %c0_9 = arith.constant 0 : index
    %11 = vector.load %arg3[%c0_7, %c0_8, %c0_9] : memref<1x8x16xf32, #tpu.memory_space<vmem>>, vector<1x8x16xf32>
    %12 = vector.shape_cast %11 : vector<1x8x16xf32> to vector<8x16xf32>
    %c0_10 = arith.constant 0 : index
    %c0_11 = arith.constant 0 : index
    %13 = vector.load %arg6[%c0_10, %c0_11] : memref<16x128xf32, #tpu.memory_space<vmem>>, vector<16x128xf32>
    %cst_12 = arith.constant dense<0.000000e+00> : vector<8x128xf32>
    %14 = tpu.matmul %12, %13, %cst_12 {dimension_numbers = #tpu.dot_dimension_numbers<[1], [0], [0], [1], [0, 0, 1, 1], [], []>} : vector<8x16xf32>, vector<16x128xf32>, vector<8x128xf32> -> vector<8x128xf32>
    %c0_13 = arith.constant 0 : index
    %c0_14 = arith.constant 0 : index
    %15 = vector.load %arg7[%c0_13, %c0_14] : memref<1x128xf32, #tpu.memory_space<vmem>>, vector<1x128xf32>
    %16 = vector.broadcast %15 : vector<1x128xf32> to vector<8x128xf32>
    %17 = arith.addf %14, %16 : vector<8x128xf32>
    %18 = math.tanh %17 : vector<8x128xf32>
    %19 = tpu.iota {dimensions = array<i32: 0>} : vector<4x128xi32>
    %20 = tpu.iota {dimensions = array<i32: 1>} : vector<4x128xi32>
    %c16_i32 = arith.constant 16 : i32
    %21 = vector.broadcast %c16_i32 : i32 to vector<4x128xi32>
    %22 = arith.muli %19, %21 : vector<4x128xi32>
    %23 = arith.cmpi sge, %20, %22 : vector<4x128xi32>
    %c1_i32 = arith.constant 1 : i32
    %24 = vector.broadcast %c1_i32 : i32 to vector<4x128xi32>
    %25 = arith.addi %19, %24 : vector<4x128xi32>
    %c16_i32_15 = arith.constant 16 : i32
    %26 = vector.broadcast %c16_i32_15 : i32 to vector<4x128xi32>
    %27 = arith.muli %25, %26 : vector<4x128xi32>
    %28 = arith.cmpi slt, %20, %27 : vector<4x128xi32>
    %29 = arith.andi %23, %28 : vector<4x128xi1>
    %c16_i32_16 = arith.constant 16 : i32
    %30 = vector.broadcast %c16_i32_16 : i32 to vector<4x128xi32>
    %31 = arith.muli %19, %30 : vector<4x128xi32>
    %c64_i32 = arith.constant 64 : i32
    %32 = vector.broadcast %c64_i32 : i32 to vector<4x128xi32>
    %33 = arith.addi %32, %31 : vector<4x128xi32>
    %34 = arith.cmpi sge, %20, %33 : vector<4x128xi32>
    %c1_i32_17 = arith.constant 1 : i32
    %35 = vector.broadcast %c1_i32_17 : i32 to vector<4x128xi32>
    %36 = arith.addi %19, %35 : vector<4x128xi32>
    %c16_i32_18 = arith.constant 16 : i32
    %37 = vector.broadcast %c16_i32_18 : i32 to vector<4x128xi32>
    %38 = arith.muli %36, %37 : vector<4x128xi32>
    %c64_i32_19 = arith.constant 64 : i32
    %39 = vector.broadcast %c64_i32_19 : i32 to vector<4x128xi32>
    %40 = arith.addi %39, %38 : vector<4x128xi32>
    %41 = arith.cmpi slt, %20, %40 : vector<4x128xi32>
    %42 = arith.andi %34, %41 : vector<4x128xi1>
    %cst_20 = arith.constant 0.000000e+00 : f32
    %43 = vector.shape_cast %10 : vector<1x128xf32> to vector<1x128xf32>
    %44 = vector.broadcast %43 : vector<1x128xf32> to vector<4x128xf32>
    %45 = vector.broadcast %cst_20 : f32 to vector<4x128xf32>
    %46 = arith.select %29, %44, %45 : vector<4x128xi1>, vector<4x128xf32>
    "tpu.trace_start"() <{level = 10 : i32, message = "hc,tc->ht"}> : () -> ()
    %cst_21 = arith.constant dense<0.000000e+00> : vector<4x8xf32>
    %47 = tpu.matmul %46, %18, %cst_21 {dimension_numbers = #tpu.dot_dimension_numbers<[1], [1], [0], [0], [0, 0, 1, 0], [], []>} : vector<4x128xf32>, vector<8x128xf32>, vector<4x8xf32> -> vector<4x8xf32>
    "tpu.trace_stop"() : () -> ()
    %48 = tpu.iota {dimensions = array<i32: 1>} : vector<4x8xi32>
    %49 = vector.broadcast %1 : i32 to vector<4x8xi32>
    %50 = arith.cmpi sge, %48, %49 : vector<4x8xi32>
    %cst_22 = arith.constant 0xFF800000 : f32
    %51 = vector.broadcast %cst_22 : f32 to vector<4x8xf32>
    %52 = arith.select %50, %51, %47 : vector<4x8xi1>, vector<4x8xf32>
    %cst_23 = arith.constant dense<0xFF800000> : vector<4xf32>
    %53 = vector.multi_reduction <maximumf>, %52, %cst_23 [1] : vector<4x8xf32> to vector<4xf32>
    %54 = vector.shape_cast %53 : vector<4xf32> to vector<4x1xf32>
    %55 = vector.broadcast %54 : vector<4x1xf32> to vector<4x8xf32>
    %56 = arith.subf %52, %55 : vector<4x8xf32>
    %57 = math.exp %56 : vector<4x8xf32>
    %cst_24 = arith.constant dense<0.000000e+00> : vector<4xf32>
    %58 = vector.multi_reduction <add>, %57, %cst_24 [1] : vector<4x8xf32> to vector<4xf32>
    %59 = vector.shape_cast %58 : vector<4xf32> to vector<4x1xf32>
    %60 = tpu.reciprocal %59 {approx = true} : vector<4x1xf32> -> vector<4x1xf32>
    %61 = arith.mulf %59, %60 : vector<4x1xf32>
    %cst_25 = arith.constant 2.000000e+00 : f32
    %62 = vector.broadcast %cst_25 : f32 to vector<4x1xf32>
    %63 = arith.subf %62, %61 : vector<4x1xf32>
    %64 = arith.mulf %60, %63 : vector<4x1xf32>
    %65 = vector.broadcast %64 : vector<4x1xf32> to vector<4x8xf32>
    %66 = arith.mulf %57, %65 : vector<4x8xf32>
    %c0_26 = arith.constant 0 : index
    %c0_27 = arith.constant 0 : index
    %c0_28 = arith.constant 0 : index
    %67 = vector.load %arg10[%c0_26, %c0_27, %c0_28] : memref<1x4x8xf32, #tpu.memory_space<vmem>>, vector<1x4x8xf32>
    %68 = vector.shape_cast %67 : vector<1x4x8xf32> to vector<4x8xf32>
    %69 = vector.shape_cast %66 : vector<4x8xf32> to vector<1x4x8xf32>
    tpu.vector_store %arg10[%c0_26, %c0_27, %c0_28], %69 {strides = array<i32>} : memref<1x4x8xf32, #tpu.memory_space<vmem>>, vector<1x4x8xf32>,
    %cst_29 = arith.constant dense<0.000000e+00> : vector<4x128xf32>
    %70 = tpu.matmul %66, %18, %cst_29 {dimension_numbers = #tpu.dot_dimension_numbers<[1], [0], [0], [1], [0, 0, 1, 1], [], []>} : vector<4x8xf32>, vector<8x128xf32>, vector<4x128xf32> -> vector<4x128xf32>
    %cst_30 = arith.constant 0.000000e+00 : f32
    %71 = vector.broadcast %cst_30 : f32 to vector<4x128xf32>
    %72 = arith.select %42, %70, %71 : vector<4x128xi1>, vector<4x128xf32>
    %cst_31 = arith.constant dense<0.000000e+00> : vector<128xf32>
    %73 = vector.multi_reduction <add>, %72, %cst_31 [0] : vector<4x128xf32> to vector<128xf32>
    %74 = vector.shape_cast %73 : vector<128xf32> to vector<1x128xf32>
    %c0_32 = arith.constant 0 : index
    %c0_33 = arith.constant 0 : index
    %75 = vector.load %arg8[%c0_32, %c0_33] : memref<128x16xf32, #tpu.memory_space<vmem>>, vector<128x16xf32>
    %cst_34 = arith.constant dense<0.000000e+00> : vector<1x16xf32>
    %76 = tpu.matmul %74, %75, %cst_34 {dimension_numbers = #tpu.dot_dimension_numbers<[1], [0], [0], [1], [0, 0, 1, 1], [], []>} : vector<1x128xf32>, vector<128x16xf32>, vector<1x16xf32> -> vector<1x16xf32>
    %c0_35 = arith.constant 0 : index
    %c0_36 = arith.constant 0 : index
    %77 = vector.load %arg9[%c0_35, %c0_36] : memref<1x16xf32, #tpu.memory_space<vmem>>, vector<1x16xf32>
    %78 = arith.addf %76, %77 : vector<1x16xf32>
    %c0_37 = arith.constant 0 : index
    %c0_38 = arith.constant 0 : index
    %c0_39 = arith.constant 0 : index
    %79 = vector.load %arg11[%c0_37, %c0_38, %c0_39] : memref<1x1x16xf32, #tpu.memory_space<vmem>>, vector<1x1x16xf32>
    %80 = vector.shape_cast %79 : vector<1x1x16xf32> to vector<1x16xf32>
    %81 = vector.shape_cast %78 : vector<1x16xf32> to vector<1x1x16xf32>
    tpu.vector_store %arg11[%c0_37, %c0_38, %c0_39], %81 {strides = array<i32>} : memref<1x1x16xf32, #tpu.memory_space<vmem>>, vector<1x1x16xf32>,
    return
  }
  func.func @transform_0(%arg0: i32, %arg1: memref<2xi32, #tpu.memory_space<smem>>) -> (i32, i32, i32) {
    %c0_i32 = arith.constant 0 : i32
    %c0_i32_0 = arith.constant 0 : i32
    %c0_i32_1 = arith.constant 0 : i32
    return %arg0, %c0_i32, %c0_i32_0 : i32, i32, i32
  }
  func.func @transform_1(%arg0: i32, %arg1: memref<2xi32, #tpu.memory_space<smem>>) -> (i32, i32, i32) {
    %c0_i32 = arith.constant 0 : i32
    %c0_i32_0 = arith.constant 0 : i32
    %c0_i32_1 = arith.constant 0 : i32
    return %arg0, %c0_i32, %c0_i32_0 : i32, i32, i32
  }
  func.func @transform_2(%arg0: i32, %arg1: memref<2xi32, #tpu.memory_space<smem>>) -> (i32, i32) {
    %c0_i32 = arith.constant 0 : i32
    %c0_i32_0 = arith.constant 0 : i32
    %c0_i32_1 = arith.constant 0 : i32
    return %c0_i32, %c0_i32_0 : i32, i32
  }
  func.func @transform_3(%arg0: i32, %arg1: memref<2xi32, #tpu.memory_space<smem>>) -> (i32, i32) {
    %c0_i32 = arith.constant 0 : i32
    %c0_i32_0 = arith.constant 0 : i32
    %c0_i32_1 = arith.constant 0 : i32
    return %c0_i32, %c0_i32_0 : i32, i32
  }
  func.func @transform_4(%arg0: i32, %arg1: memref<2xi32, #tpu.memory_space<smem>>) -> (i32, i32) {
    %c0_i32 = arith.constant 0 : i32
    %c0_i32_0 = arith.constant 0 : i32
    %c0_i32_1 = arith.constant 0 : i32
    return %c0_i32, %c0_i32_0 : i32, i32
  }
  func.func @transform_5(%arg0: i32, %arg1: memref<2xi32, #tpu.memory_space<smem>>) -> (i32, i32) {
    %c0_i32 = arith.constant 0 : i32
    %c0_i32_0 = arith.constant 0 : i32
    %c0_i32_1 = arith.constant 0 : i32
    return %c0_i32, %c0_i32_0 : i32, i32
  }
  func.func @transform_6(%arg0: i32, %arg1: memref<2xi32, #tpu.memory_space<smem>>) -> (i32, i32) {
    %c0_i32 = arith.constant 0 : i32
    %c0_i32_0 = arith.constant 0 : i32
    %c0_i32_1 = arith.constant 0 : i32
    return %c0_i32, %c0_i32_0 : i32, i32
  }
  func.func @transform_7(%arg0: i32, %arg1: memref<2xi32, #tpu.memory_space<smem>>) -> (i32, i32) {
    %c0_i32 = arith.constant 0 : i32
    %c0_i32_0 = arith.constant 0 : i32
    %c0_i32_1 = arith.constant 0 : i32
    return %c0_i32, %c0_i32_0 : i32, i32
  }
  func.func @transform_8(%arg0: i32, %arg1: memref<2xi32, #tpu.memory_space<smem>>) -> (i32, i32, i32) {
    %c0_i32 = arith.constant 0 : i32
    %c0_i32_0 = arith.constant 0 : i32
    %c0_i32_1 = arith.constant 0 : i32
    return %arg0, %c0_i32, %c0_i32_0 : i32, i32, i32
  }
  func.func @transform_9(%arg0: i32, %arg1: memref<2xi32, #tpu.memory_space<smem>>) -> (i32, i32, i32) {
    %c0_i32 = arith.constant 0 : i32
    %c0_i32_0 = arith.constant 0 : i32
    %c0_i32_1 = arith.constant 0 : i32
    return %arg0, %c0_i32, %c0_i32_0 : i32, i32, i32
  }
}

</mosaic_0001>

<llo_original>
// kernel: attention_forward.1
$region0: #{attention_forward.1}
  #allocation0 [shape = 'u32[]', space=smem, size = 0x4, offset = 0x4, fixed_abs, tag = 'smem constant byte address 0x4 - core index']
  #allocation1 [shape = 'u32[144,128]{1,0:T(1,128)}', space=vmem, size = 0x12000, scoped, tag = 'internal scratch']
  #allocation2 [shape = 's32[1]{0}', space=sflag, size = 0x4, scoped, tag = 'scoped memory for attention_forward.1']
  #allocation3 [shape = 'u8[512]{0}', space=smem, size = 0x200, scoped, tag = 'prefetched SMEM operand 0']
  %s0 = inlined_call_operand.vmem [shape: s32[2], index: 0, kind: input, shape index: {}]
  %s1 = inlined_call_operand.vmem [shape: f32[2,1,32], index: 1, kind: input, shape index: {}]
  %s2 = inlined_call_operand.vmem [shape: f32[2,8,16], index: 2, kind: input, shape index: {}]
  %s3 = inlined_call_operand.vmem [shape: f32[32,128], index: 3, kind: input, shape index: {}]
  %s4 = inlined_call_operand.vmem [shape: f32[1,128], index: 4, kind: input, shape index: {}]
  %s5 = inlined_call_operand.vmem [shape: f32[16,128], index: 5, kind: input, shape index: {}]
  %s6 = inlined_call_operand.vmem [shape: f32[1,128], index: 6, kind: input, shape index: {}]
  %s7 = inlined_call_operand.vmem [shape: f32[128,16], index: 7, kind: input, shape index: {}]
  %s8 = inlined_call_operand.vmem [shape: f32[1,16], index: 8, kind: input, shape index: {}]
  %s9 = inlined_call_operand.hbm [shape: f32[2,4,8], index: 9, kind: output, shape index: {0}]
  %s10 = inlined_call_operand.hbm [shape: f32[2,1,16], index: 10, kind: output, shape index: {1}]
  %11 = xla_tuple %s9, %s10
  %s12 = sld [smem:[#allocation0]]
  $region73: #{attention_forward.1} parent=0
    _
  %s14 = ssub.s32 1, %s12
  %s15 = scalar_select 0, %s14, %s12
  %s16 = sshll.u32 %s0, 4
  %s17 = int_to_ptr.vmem [resolvable:$true] %s16
  %19 = dma.vmem_to_smem %s17, 16, [#allocation3], [#allocation2]
  %20 = dma.done [#allocation2], 16
  %21 = sfence
  $region1: #{attention_forward.1} parent=0
    #allocation4 [shape = 'u8[4096]{0}', space=vmem, size = 0x1000, scoped, tag = 'output window, operand 0']
    #allocation5 [shape = 's32[2]{0}', space=sflag, size = 0x8, scoped, tag = 'scoped memory for attention_forward.1']
    #allocation6 [shape = 'u8[1024]{0}', space=vmem, size = 0x400, scoped, tag = 'output window, operand 1']
    #allocation7 [shape = 's32[2]{0}', space=sflag, size = 0x8, scoped, tag = 'scoped memory for attention_forward.1']
    %22 = vsyncpa [#allocation5], 0
    %s23 = scalar_lea.sflag [#allocation5], 1
    %24 = vsyncpa %s23, 0
    %25 = vsyncpa [#allocation7], 0
    %s26 = scalar_lea.sflag [#allocation7], 1
    %27 = vsyncpa %s26, 0
    loop: start=0, step=1, limit=4
    $region2: #{attention_forward.1} parent=1 // loop_pre_header
      _
    $region3: #{attention_forward.1} parent=1 // loop_header
      %s29 = sphi 0, %s33
      %p30 = scmp.ge.s32.totalorder %s29, 4
      %s39 = sphi 0, %s41
      %s42 = sphi 0, %s39
      %s43 = sphi 0, %s42
      %s59 = sphi 0, %s43
      %s65 = sphi 0, %s67
      %s68 = sphi 0, %s65
      %s69 = sphi 0, %s68
      %s85 = sphi 0, %s69
      %s89 = sphi 0, %s89
      %s91 = sphi 0, %s89
      %s92 = sphi 0, %s91
      %s106 = sphi 0, %s92
      %s110 = sphi 0, %s110
      %s112 = sphi 0, %s110
      %s113 = sphi 0, %s112
      %s127 = sphi 0, %s113
      %s131 = sphi 0, %s131
      %s133 = sphi 0, %s131
      %s134 = sphi 0, %s133
      %s148 = sphi 0, %s134
      %s152 = sphi 0, %s152
      %s154 = sphi 0, %s152
      %s155 = sphi 0, %s154
      %s169 = sphi 0, %s155
      %s173 = sphi 0, %s173
      %s175 = sphi 0, %s173
      %s176 = sphi 0, %s175
      %s190 = sphi 0, %s176
      %s194 = sphi 0, %s194
      %s196 = sphi 0, %s194
      %s197 = sphi 0, %s196
      %s211 = sphi 0, %s197
      %s217 = sphi 0, %s219
      %s220 = sphi 0, %s217
      %s221 = sphi 0, %s220
      %s237 = sphi 0, %s221
      %s243 = sphi 0, %s245
      %s246 = sphi 0, %s243
      %s247 = sphi 0, %s246
      %s263 = sphi 0, %s247
    $region4: #{attention_forward.1} parent=1 // loop_header_branch
      %32 = sbr.rel (%p30) target = $region8
    $region5: #{attention_forward.1} parent=1 // loop_body
      %s34 = ssub.s32 %s29, 1
      %s35 = ssub.s32 %s29, 2
      %s36 = sadd.s32 %s29, 1
      %s37 = ssub.s32 %s29, %s36
      %p38 = scmp.eq.s32.totalorder %s37, 0
      %s40 = sadd.s32 %s39, 1
      %s41 = scalar_select %p38, %s39, %s40
      %p44 = pneg %p38
      %p45 = scmp.eq.s32.totalorder %s29, 1
      %p46 = por %p44, %p45
      %p47 = scmp.ne.s32.totalorder %s39, %s42
      %p48 = scmp.eq.s32.totalorder %s29, 0
      %p49 = por %p47, %p48
      %p50 = scmp.ne.s32.totalorder %s39, %s42
      %p51 = scmp.eq.s32.totalorder %s34, 1
      %p52 = por %p50, %p51
      %p53 = scmp.ne.s32.totalorder %s42, %s43
      %p54 = scmp.eq.s32.totalorder %s34, 0
      %p55 = por %p53, %p54
      %p56 = scmp.ne.s32.totalorder %s42, %s43
      %p57 = scmp.eq.s32.totalorder %s35, 1
      %p58 = por %p56, %p57
      %p60 = scmp.ne.s32.totalorder %s43, %s59
      %p61 = scmp.eq.s32.totalorder %s35, 0
      %p62 = por %p60, %p61
      %s63 = ssub.s32 %s29, %s36
      %p64 = scmp.eq.s32.totalorder %s63, 0
      %s66 = sadd.s32 %s65, 1
      %s67 = scalar_select %p64, %s65, %s66
      %p70 = pneg %p64
      %p71 = scmp.eq.s32.totalorder %s29, 1
      %p72 = por %p70, %p71
      %p73 = scmp.ne.s32.totalorder %s65, %s68
      %p74 = scmp.eq.s32.totalorder %s29, 0
      %p75 = por %p73, %p74
      %p76 = scmp.ne.s32.totalorder %s65, %s68
      %p77 = scmp.eq.s32.totalorder %s34, 1
      %p78 = por %p76, %p77
      %p79 = scmp.ne.s32.totalorder %s68, %s69
      %p80 = scmp.eq.s32.totalorder %s34, 0
      %p81 = por %p79, %p80
      %p82 = scmp.ne.s32.totalorder %s68, %s69
      %p83 = scmp.eq.s32.totalorder %s35, 1
      %p84 = por %p82, %p83
      %p86 = scmp.ne.s32.totalorder %s69, %s85
      %p87 = scmp.eq.s32.totalorder %s35, 0
      %p88 = por %p86, %p87
      %s90 = sadd.s32 %s89, 1
      %p93 = scmp.eq.s32.totalorder %s29, 1
      %p94 = scmp.ne.s32.totalorder %s89, %s91
      %p95 = scmp.eq.s32.totalorder %s29, 0
      %p96 = por %p94, %p95
      %p97 = scmp.ne.s32.totalorder %s89, %s91
      %p98 = scmp.eq.s32.totalorder %s34, 1
      %p99 = por %p97, %p98
      %p100 = scmp.ne.s32.totalorder %s91, %s92
      %p101 = scmp.eq.s32.totalorder %s34, 0
      %p102 = por %p100, %p101
      %p103 = scmp.ne.s32.totalorder %s91, %s92
      %p104 = scmp.eq.s32.totalorder %s35, 1
      %p105 = por %p103, %p104
      %p107 = scmp.ne.s32.totalorder %s92, %s106
      %p108 = scmp.eq.s32.totalorder %s35, 0
      %p109 = por %p107, %p108
      %s111 = sadd.s32 %s110, 1
      %p114 = scmp.eq.s32.totalorder %s29, 1
      %p115 = scmp.ne.s32.totalorder %s110, %s112
      %p116 = scmp.eq.s32.totalorder %s29, 0
      %p117 = por %p115, %p116
      %p118 = scmp.ne.s32.totalorder %s110, %s112
      %p119 = scmp.eq.s32.totalorder %s34, 1
      %p120 = por %p118, %p119
      %p121 = scmp.ne.s32.totalorder %s112, %s113
      %p122 = scmp.eq.s32.totalorder %s34, 0
      %p123 = por %p121, %p122
      %p124 = scmp.ne.s32.totalorder %s112, %s113
      %p125 = scmp.eq.s32.totalorder %s35, 1
      %p126 = por %p124, %p125
      %p128 = scmp.ne.s32.totalorder %s113, %s127
      %p129 = scmp.eq.s32.totalorder %s35, 0
      %p130 = por %p128, %p129
      %s132 = sadd.s32 %s131, 1
      %p135 = scmp.eq.s32.totalorder %s29, 1
      %p136 = scmp.ne.s32.totalorder %s131, %s133
      %p137 = scmp.eq.s32.totalorder %s29, 0
      %p138 = por %p136, %p137
      %p139 = scmp.ne.s32.totalorder %s131, %s133
      %p140 = scmp.eq.s32.totalorder %s34, 1
      %p141 = por %p139, %p140
      %p142 = scmp.ne.s32.totalorder %s133, %s134
      %p143 = scmp.eq.s32.totalorder %s34, 0
      %p144 = por %p142, %p143
      %p145 = scmp.ne.s32.totalorder %s133, %s134
      %p146 = scmp.eq.s32.totalorder %s35, 1
      %p147 = por %p145, %p146
      %p149 = scmp.ne.s32.totalorder %s134, %s148
      %p150 = scmp.eq.s32.totalorder %s35, 0
      %p151 = por %p149, %p150
      %s153 = sadd.s32 %s152, 1
      %p156 = scmp.eq.s32.totalorder %s29, 1
      %p157 = scmp.ne.s32.totalorder %s152, %s154
      %p158 = scmp.eq.s32.totalorder %s29, 0
      %p159 = por %p157, %p158
      %p160 = scmp.ne.s32.totalorder %s152, %s154
      %p161 = scmp.eq.s32.totalorder %s34, 1
      %p162 = por %p160, %p161
      %p163 = scmp.ne.s32.totalorder %s154, %s155
      %p164 = scmp.eq.s32.totalorder %s34, 0
      %p165 = por %p163, %p164
      %p166 = scmp.ne.s32.totalorder %s154, %s155
      %p167 = scmp.eq.s32.totalorder %s35, 1
      %p168 = por %p166, %p167
      %p170 = scmp.ne.s32.totalorder %s155, %s169
      %p171 = scmp.eq.s32.totalorder %s35, 0
      %p172 = por %p170, %p171
      %s174 = sadd.s32 %s173, 1
      %p177 = scmp.eq.s32.totalorder %s29, 1
      %p178 = scmp.ne.s32.totalorder %s173, %s175
      %p179 = scmp.eq.s32.totalorder %s29, 0
      %p180 = por %p178, %p179
      %p181 = scmp.ne.s32.totalorder %s173, %s175
      %p182 = scmp.eq.s32.totalorder %s34, 1
      %p183 = por %p181, %p182
      %p184 = scmp.ne.s32.totalorder %s175, %s176
      %p185 = scmp.eq.s32.totalorder %s34, 0
      %p186 = por %p184, %p185
      %p187 = scmp.ne.s32.totalorder %s175, %s176
      %p188 = scmp.eq.s32.totalorder %s35, 1
      %p189 = por %p187, %p188
      %p191 = scmp.ne.s32.totalorder %s176, %s190
      %p192 = scmp.eq.s32.totalorder %s35, 0
      %p193 = por %p191, %p192
      %s195 = sadd.s32 %s194, 1
      %p198 = scmp.eq.s32.totalorder %s29, 1
      %p199 = scmp.ne.s32.totalorder %s194, %s196
      %p200 = scmp.eq.s32.totalorder %s29, 0
      %p201 = por %p199, %p200
      %p202 = scmp.ne.s32.totalorder %s194, %s196
      %p203 = scmp.eq.s32.totalorder %s34, 1
      %p204 = por %p202, %p203
      %p205 = scmp.ne.s32.totalorder %s196, %s197
      %p206 = scmp.eq.s32.totalorder %s34, 0
      %p207 = por %p205, %p206
      %p208 = scmp.ne.s32.totalorder %s196, %s197
      %p209 = scmp.eq.s32.totalorder %s35, 1
      %p210 = por %p208, %p209
      %p212 = scmp.ne.s32.totalorder %s197, %s211
      %p213 = scmp.eq.s32.totalorder %s35, 0
      %p214 = por %p212, %p213
      %s215 = ssub.s32 %s29, %s36
      %p216 = scmp.eq.s32.totalorder %s215, 0
      %s218 = sadd.s32 %s217, 1
      %s219 = scalar_select %p216, %s217, %s218
      %p222 = pneg %p216
      %p223 = scmp.eq.s32.totalorder %s29, 1
      %p224 = por %p222, %p223
      %p225 = scmp.ne.s32.totalorder %s217, %s220
      %p226 = scmp.eq.s32.totalorder %s29, 0
      %p227 = por %p225, %p226
      %p228 = scmp.ne.s32.totalorder %s217, %s220
      %p229 = scmp.eq.s32.totalorder %s34, 1
      %p230 = por %p228, %p229
      %p231 = scmp.ne.s32.totalorder %s220, %s221
      %p232 = scmp.eq.s32.totalorder %s34, 0
      %p233 = por %p231, %p232
      %p234 = scmp.ne.s32.totalorder %s220, %s221
      %p235 = scmp.eq.s32.totalorder %s35, 1
      %p236 = por %p234, %p235
      %p238 = scmp.ne.s32.totalorder %s221, %s237
      %p239 = scmp.eq.s32.totalorder %s35, 0
      %p240 = por %p238, %p239
      %s241 = ssub.s32 %s29, %s36
      %p242 = scmp.eq.s32.totalorder %s241, 0
      %s244 = sadd.s32 %s243, 1
      %s245 = scalar_select %p242, %s243, %s244
      %p248 = pneg %p242
      %p249 = scmp.eq.s32.totalorder %s29, 1
      %p250 = por %p248, %p249
      %p251 = scmp.ne.s32.totalorder %s243, %s246
      %p252 = scmp.eq.s32.totalorder %s29, 0
      %p253 = por %p251, %p252
      %p254 = scmp.ne.s32.totalorder %s243, %s246
      %p255 = scmp.eq.s32.totalorder %s34, 1
      %p256 = por %p254, %p255
      %p257 = scmp.ne.s32.totalorder %s246, %s247
      %p258 = scmp.eq.s32.totalorder %s34, 0
      %p259 = por %p257, %p258
      %p260 = scmp.ne.s32.totalorder %s246, %s247
      %p261 = scmp.eq.s32.totalorder %s35, 1
      %p262 = por %p260, %p261
      %p264 = scmp.ne.s32.totalorder %s247, %s263
      %p265 = scmp.eq.s32.totalorder %s35, 0
      %p266 = por %p264, %p265
      %p267 = scmp.le.s32.totalorder 1, %s29
      %p268 = scmp.lt.s32.totalorder %s29, 3
      %p269 = pnand %p267, %p268
      %p270 = pneg %p269
      // Predicated region
      $region9: #{attention_forward.1} parent=5 // pred_check
        _
      $region10: #{attention_forward.1} parent=5 // pred_check_branch
        %272 = sbr.rel (%p269) target = $region12
      $region11: #{attention_forward.1} parent=5 // pred_region
        %s273 = ssub.s32 %s29, 1
        // Predicated region
        $region13: #{attention_forward.1} parent=11 // pred_check
          %p274 = pneg %p102
        $region14: #{attention_forward.1} parent=11 // pred_check_branch
          %276 = sbr.rel (%p274) target = $region16
        $region15: #{attention_forward.1} parent=11 // pred_region
          _
        $region16: #{attention_forward.1} parent=11 // pred_fallthru
          _
        // Predicated region
        $region17: #{attention_forward.1} parent=11 // pred_check
          %p277 = pneg %p123
        $region18: #{attention_forward.1} parent=11 // pred_check_branch
          %279 = sbr.rel (%p277) target = $region20
        $region19: #{attention_forward.1} parent=11 // pred_region
          _
        $region20: #{attention_forward.1} parent=11 // pred_fallthru
          _
        // Predicated region
        $region21: #{attention_forward.1} parent=11 // pred_check
          %p280 = pneg %p144
        $region22: #{attention_forward.1} parent=11 // pred_check_branch
          %282 = sbr.rel (%p280) target = $region24
        $region23: #{attention_forward.1} parent=11 // pred_region
          _
        $region24: #{attention_forward.1} parent=11 // pred_fallthru
          _
        // Predicated region
        $region25: #{attention_forward.1} parent=11 // pred_check
          %p283 = pneg %p165
        $region26: #{attention_forward.1} parent=11 // pred_check_branch
          %285 = sbr.rel (%p283) target = $region28
        $region27: #{attention_forward.1} parent=11 // pred_region
          _
        $region28: #{attention_forward.1} parent=11 // pred_fallthru
          _
        // Predicated region
        $region29: #{attention_forward.1} parent=11 // pred_check
          %p286 = pneg %p186
        $region30: #{attention_forward.1} parent=11 // pred_check_branch
          %288 = sbr.rel (%p286) target = $region32
        $region31: #{attention_forward.1} parent=11 // pred_region
          _
        $region32: #{attention_forward.1} parent=11 // pred_fallthru
          _
        // Predicated region
        $region33: #{attention_forward.1} parent=11 // pred_check
          %p289 = pneg %p207
        $region34: #{attention_forward.1} parent=11 // pred_check_branch
          %291 = sbr.rel (%p289) target = $region36
        $region35: #{attention_forward.1} parent=11 // pred_region
          _
        $region36: #{attention_forward.1} parent=11 // pred_fallthru
          _
      $region12: #{attention_forward.1} parent=5 // pred_fallthru
        _
      %p292 = scmp.lt.s32.totalorder %s29, 2
      // Predicated region
      $region37: #{attention_forward.1} parent=5 // pred_check
        %p293 = pneg %p292
      $region38: #{attention_forward.1} parent=5 // pred_check_branch
        %295 = sbr.rel (%p293) target = $region40
      $region39: #{attention_forward.1} parent=5 // pred_region
        // Predicated region
        $region41: #{attention_forward.1} parent=39 // pred_check
          %p296 = pneg %p49
        $region42: #{attention_forward.1} parent=39 // pred_check_branch
          %298 = sbr.rel (%p296) target = $region44
        $region43: #{attention_forward.1} parent=39 // pred_region
          %p299 = scmp.lt.s32.totalorder %s29, 1
          %s300 = scalar_select %p299, %s29, 1
          %s301 = scalar_lea.vmem %s1, %s300
        $region44: #{attention_forward.1} parent=39 // pred_fallthru
          _
        // Predicated region
        $region45: #{attention_forward.1} parent=39 // pred_check
          %p302 = pneg %p75
        $region46: #{attention_forward.1} parent=39 // pred_check_branch
          %304 = sbr.rel (%p302) target = $region48
        $region47: #{attention_forward.1} parent=39 // pred_region
          %p305 = scmp.lt.s32.totalorder %s29, 1
          %s306 = scalar_select %p305, %s29, 1
          %s307 = smul.addr %s306, 8
          %s308 = scalar_lea.vmem %s2, %s307
        $region48: #{attention_forward.1} parent=39 // pred_fallthru
          _
      $region40: #{attention_forward.1} parent=5 // pred_fallthru
        _
      %p309 = scmp.le.s32.totalorder 1, %s29
      %p310 = scmp.lt.s32.totalorder %s29, 3
      %p311 = pnand %p309, %p310
      %p312 = pneg %p311
      // Predicated region
      $region49: #{attention_forward.1} parent=5 // pred_check
        _
      $region50: #{attention_forward.1} parent=5 // pred_check_branch
        %314 = sbr.rel (%p311) target = $region52
      $region51: #{attention_forward.1} parent=5 // pred_region
        %s315 = ssub.s32 %s29, 1
        %p316 = scmp.lt.s32.totalorder %s34, 1
        %s317 = scalar_select %p316, %s34, 1
        %s318 = scalar_lea.vmem %s1, %s317
        %p319 = pneg %p55
        %p320 = pneg %p52
        %p321 = scmp.lt.s32.totalorder %s34, 1
        %s322 = scalar_select %p321, %s34, 1
        %s323 = smul.addr %s322, 8
        %s324 = scalar_lea.vmem %s2, %s323
        %p325 = pneg %p81
        %p326 = pneg %p78
        %p327 = pneg %p102
        %p328 = pneg %p99
        %p329 = pneg %p123
        %p330 = pneg %p120
        %p331 = pneg %p144
        %p332 = pneg %p141
        %p333 = pneg %p165
        %p334 = pneg %p162
        %p335 = pneg %p186
        %p336 = pneg %p183
        %p337 = pneg %p207
        %p338 = pneg %p204
        %p339 = pneg %p233
        %p340 = pneg %p230
        %s341 = sand.u32 %s220, 1
        %s342 = scalar_lea.sflag [#allocation5], %s341
        %s343 = sand.u32 %s220, 1
        %s344 = smul.addr %s343, 4
        %s345 = scalar_lea.vmem [#allocation4], %s344
        %p346 = pneg %p259
        %p347 = pneg %p256
        %s348 = sand.u32 %s246, 1
        %s349 = scalar_lea.sflag [#allocation7], %s348
        %s350 = sand.u32 %s246, 1
        %s351 = scalar_lea.vmem [#allocation6], %s350
        %p352 = scmp.lt.s32.totalorder %s34, 1
        %s353 = scalar_select %p352, %s34, 1
        %s354 = scalar_lea.vmem %s1, %s353
        %p355 = scmp.lt.s32.totalorder %s34, 1
        %s356 = scalar_select %p355, %s34, 1
        %s357 = smul.addr %s356, 8
        %s358 = scalar_lea.vmem %s2, %s357
        %s359 = sld [smem:[#allocation3 + %s34]]
        %v360 = vld [vmem:[%s354] sm:$0x1]
        %v361 = vld [vmem:[%s3] sm:$0xff]
        %v362 = vld [vmem:[%s3 + $0x8] sm:$0xff]
        %v363 = vld [vmem:[%s3 + $0x10] sm:$0xff]
        %v364 = vld [vmem:[%s3 + $0x18] sm:$0xff]
        %v365 = vld [vmem:[%s4] sm:$0x1]
        %vm366 = vcmask 261120
        %v368 = vsel %vm366, %v360, 0
        %370 = vmatprep.subr.mxu0 0.0
        %371 = vmatpush1.msra.mxu0 0.0
        %372 = vmatprep.subr.mxu0 0.0
        %373 = vmatpush1.msra.mxu0 0.0
        %374 = vmatprep.subr.mxu0 0.0
        %375 = vmatpush1.msra.mxu0 0.0
        %376 = vmatprep.subr.mxu0 0.0
        %377 = vmatpush1.msra.mxu0 0.0
        %378 = vmatprep.subr.mxu0 0.0
        %379 = vmatpush1.msra.mxu0 0.0
        %380 = vmatprep.subr.mxu0 0.0
        %381 = vmatpush1.msra.mxu0 0.0
        %382 = vmatprep.subr.mxu0 0.0
        %383 = vmatpush1.msra.mxu0 0.0
        %384 = vmatprep.subr.mxu0 0.0
        %385 = vmatpush1.msra.mxu0 0.0
        %386 = vmatprep.subr.mxu0 0.0
        %387 = vmatpush1.msra.mxu0 0.0
        %388 = vmatprep.subr.mxu0 0.0
        %389 = vmatpush1.msra.mxu0 0.0
        %390 = vmatprep.subr.mxu0 0.0
        %391 = vmatpush1.msra.mxu0 0.0
        %392 = vmatprep.subr.mxu0 0.0
        %393 = vmatpush1.msra.mxu0 0.0
        %394 = vmatprep.subr.mxu0 0.0
        %395 = vmatpush1.msra.mxu0 %v364
        %396 = vmatprep.subr.mxu0 0.0
        %397 = vmatpush1.msra.mxu0 %v363
        %398 = vmatprep.subr.mxu0 0.0
        %399 = vmatpush1.msra.mxu0 %v362
        %400 = vmatprep.subr.mxu0 0.0
        %401 = vmatpush1.msra.mxu0 %v361
        %402 = vmatprep.subr.mxu0 0.0
        %403 = vmatpush2.msra.mxu0 0.0
        %404 = vmatprep.subr.mxu0 0.0
        %405 = vmatpush2.msra.mxu0 0.0
        %406 = vmatprep.subr.mxu0 0.0
        %407 = vmatpush2.msra.mxu0 0.0
        %408 = vmatprep.subr.mxu0 0.0
        %409 = vmatpush2.msra.mxu0 0.0
        %410 = vmatprep.subr.mxu0 0.0
        %411 = vmatpush2.msra.mxu0 0.0
        %412 = vmatprep.subr.mxu0 0.0
        %413 = vmatpush2.msra.mxu0 0.0
        %414 = vmatprep.subr.mxu0 0.0
        %415 = vmatpush2.msra.mxu0 0.0
        %416 = vmatprep.subr.mxu0 0.0
        %417 = vmatpush2.msra.mxu0 0.0
        %418 = vmatprep.subr.mxu0 0.0
        %419 = vmatpush2.msra.mxu0 0.0
        %420 = vmatprep.subr.mxu0 0.0
        %421 = vmatpush2.msra.mxu0 0.0
        %422 = vmatprep.subr.mxu0 0.0
        %423 = vmatpush2.msra.mxu0 0.0
        %424 = vmatprep.subr.mxu0 0.0
        %425 = vmatpush2.msra.mxu0 0.0
        %426 = vmatprep.subr.mxu0 0.0
        %427 = vmatpush2.msra.mxu0 0.0
        %428 = vmatprep.subr.mxu0 0.0
        %429 = vmatpush2.msra.mxu0 0.0
        %430 = vmatprep.subr.mxu0 0.0
        %431 = vmatpush2.msra.mxu0 0.0
        %432 = vmatprep.subr.mxu0 0.0
        %433 = vmatpush2.msra.mxu0 0.0
        %434 = vmatprep.mubr.f32.mxu0 0.0
        %435 = vmatmul.mubr.f32.gmra.mxu0 %v368
        %v436 = vpop.f32.mrf.mxu0
        %v437 = vadd.f32 %v365, %v436
        %v438 = vpop.f32.mrf.mxu0
        %439 = vdwg.mxu0
        %v440 = vtanh.pop %v437
        %v441 = vmul.f32 %v440, 0.25
        %v442 = vld [vmem:[%s358] sm:$0xff]
        %v443 = vld [vmem:[%s5] sm:$0xff]
        %v444 = vld [vmem:[%s5 + $0x8] sm:$0xff]
        %v445 = vld [vmem:[%s6] sm:$0x1]
        %v447 = vlaneseq
        %v448 = vshrl.u32 %v447, 7
        %v449 = vsub.s32 0, %v448
        %v450 = vrot.slane %v445, %v449
        %vm452 = vcmask 130048
        %v454 = vsel %vm452, %v442, 0
        %456 = vmatprep.subr.mxu0 0.0
        %457 = vmatpush1.msra.mxu0 0.0
        %458 = vmatprep.subr.mxu0 0.0
        %459 = vmatpush1.msra.mxu0 0.0
        %460 = vmatprep.subr.mxu0 0.0
        %461 = vmatpush1.msra.mxu0 0.0
        %462 = vmatprep.subr.mxu0 0.0
        %463 = vmatpush1.msra.mxu0 0.0
        %464 = vmatprep.subr.mxu0 0.0
        %465 = vmatpush1.msra.mxu0 0.0
        %466 = vmatprep.subr.mxu0 0.0
        %467 = vmatpush1.msra.mxu0 0.0
        %468 = vmatprep.subr.mxu0 0.0
        %469 = vmatpush1.msra.mxu0 0.0
        %470 = vmatprep.subr.mxu0 0.0
        %471 = vmatpush1.msra.mxu0 0.0
        %472 = vmatprep.subr.mxu0 0.0
        %473 = vmatpush1.msra.mxu0 0.0
        %474 = vmatprep.subr.mxu0 0.0
        %475 = vmatpush1.msra.mxu0 0.0
        %476 = vmatprep.subr.mxu0 0.0
        %477 = vmatpush1.msra.mxu0 0.0
        %478 = vmatprep.subr.mxu0 0.0
        %479 = vmatpush1.msra.mxu0 0.0
        %480 = vmatprep.subr.mxu0 0.0
        %481 = vmatpush1.msra.mxu0 0.0
        %482 = vmatprep.subr.mxu0 0.0
        %483 = vmatpush1.msra.mxu0 0.0
        %484 = vmatprep.subr.mxu0 0.0
        %485 = vmatpush1.msra.mxu0 %v444
        %486 = vmatprep.subr.mxu0 0.0
        %487 = vmatpush1.msra.mxu0 %v443
        %488 = vmatprep.subr.mxu0 0.0
        %489 = vmatpush2.msra.mxu0 0.0
        %490 = vmatprep.subr.mxu0 0.0
        %491 = vmatpush2.msra.mxu0 0.0
        %492 = vmatprep.subr.mxu0 0.0
        %493 = vmatpush2.msra.mxu0 0.0
        %494 = vmatprep.subr.mxu0 0.0
        %495 = vmatpush2.msra.mxu0 0.0
        %496 = vmatprep.subr.mxu0 0.0
        %497 = vmatpush2.msra.mxu0 0.0
        %498 = vmatprep.subr.mxu0 0.0
        %499 = vmatpush2.msra.mxu0 0.0
        %500 = vmatprep.subr.mxu0 0.0
        %501 = vmatpush2.msra.mxu0 0.0
        %502 = vmatprep.subr.mxu0 0.0
        %503 = vmatpush2.msra.mxu0 0.0
        %504 = vmatprep.subr.mxu0 0.0
        %505 = vmatpush2.msra.mxu0 0.0
        %506 = vmatprep.subr.mxu0 0.0
        %507 = vmatpush2.msra.mxu0 0.0
        %508 = vmatprep.subr.mxu0 0.0
        %509 = vmatpush2.msra.mxu0 0.0
        %510 = vmatprep.subr.mxu0 0.0
        %511 = vmatpush2.msra.mxu0 0.0
        %512 = vmatprep.subr.mxu0 0.0
        %513 = vmatpush2.msra.mxu0 0.0
        %514 = vmatprep.subr.mxu0 0.0
        %515 = vmatpush2.msra.mxu0 0.0
        %516 = vmatprep.subr.mxu0 0.0
        %517 = vmatpush2.msra.mxu0 0.0
        %518 = vmatprep.subr.mxu0 0.0
        %519 = vmatpush2.msra.mxu0 0.0
        %520 = vmatprep.mubr.f32.mxu0 0.0
        %521 = vmatmul.mubr.f32.gmra.mxu0 %v454
        %v522 = vpop.f32.mrf.mxu0
        %v523 = vadd.f32 %v450, %v522
        %v524 = vpop.f32.mrf.mxu0
        %525 = vdwg.mxu0
        %v526 = vtanh.pop %v523
        %v527 = vlaneseq
        %v528 = vshrl.u32 %v527, 7
        %v529 = vlaneseq
        %v530 = vand.u32 %v529, 127
        %v531 = vmul.u32 %v528, 16
        %vm532 = vcmp.ge.s32.totalorder %v530, %v531
        %v533 = vadd.s32 %v528, 1
        %v534 = vmul.u32 %v533, 16
        %vm535 = vcmp.lt.s32.totalorder %v530, %v534
        %vm536 = vmand %vm532, %vm535
        %v537 = vadd.s32 %v531, 64
        %vm538 = vcmp.ge.s32.totalorder %v530, %v537
        %v539 = vadd.s32 %v534, 64
        %vm540 = vcmp.lt.s32.totalorder %v530, %v539
        %vm541 = vmand %vm538, %vm540
        %v542 = vlaneseq
        %v543 = vshrl.u32 %v542, 7
        %v544 = vsub.s32 0, %v543
        %v545 = vrot.slane %v441, %v544
        %v546 = vsel %vm536, %v545, 0.0
        %547 = vmatprep.subr.mxu0 0.0
        %548 = vmatpush1.xpose.msra.mxu0 0.0
        %549 = vmatprep.subr.mxu0 0.0
        %550 = vmatpush1.xpose.msra.mxu0 0.0
        %551 = vmatprep.subr.mxu0 0.0
        %552 = vmatpush1.xpose.msra.mxu0 0.0
        %553 = vmatprep.subr.mxu0 0.0
        %554 = vmatpush1.xpose.msra.mxu0 0.0
        %555 = vmatprep.subr.mxu0 0.0
        %556 = vmatpush1.xpose.msra.mxu0 0.0
        %557 = vmatprep.subr.mxu0 0.0
        %558 = vmatpush1.xpose.msra.mxu0 0.0
        %559 = vmatprep.subr.mxu0 0.0
        %560 = vmatpush1.xpose.msra.mxu0 0.0
        %561 = vmatprep.subr.mxu0 0.0
        %562 = vmatpush1.xpose.msra.mxu0 0.0
        %563 = vmatprep.subr.mxu0 0.0
        %564 = vmatpush1.xpose.msra.mxu0 0.0
        %565 = vmatprep.subr.mxu0 0.0
        %566 = vmatpush1.xpose.msra.mxu0 0.0
        %567 = vmatprep.subr.mxu0 0.0
        %568 = vmatpush1.xpose.msra.mxu0 0.0
        %569 = vmatprep.subr.mxu0 0.0
        %570 = vmatpush1.xpose.msra.mxu0 0.0
        %571 = vmatprep.subr.mxu0 0.0
        %572 = vmatpush1.xpose.msra.mxu0 0.0
        %573 = vmatprep.subr.mxu0 0.0
        %574 = vmatpush1.xpose.msra.mxu0 0.0
        %575 = vmatprep.subr.mxu0 0.0
        %576 = vmatpush1.xpose.msra.mxu0 0.0
        %577 = vmatprep.subr.mxu0 0.0
        %578 = vmatpush1.xpose.msra.mxu0 %v526
        %579 = vmatprep.subr.mxu0 0.0
        %580 = vmatpush2.xpose.msra.mxu0 0.0
        %581 = vmatprep.subr.mxu0 0.0
        %582 = vmatpush2.xpose.msra.mxu0 0.0
        %583 = vmatprep.subr.mxu0 0.0
        %584 = vmatpush2.xpose.msra.mxu0 0.0
        %585 = vmatprep.subr.mxu0 0.0
        %586 = vmatpush2.xpose.msra.mxu0 0.0
        %587 = vmatprep.subr.mxu0 0.0
        %588 = vmatpush2.xpose.msra.mxu0 0.0
        %589 = vmatprep.subr.mxu0 0.0
        %590 = vmatpush2.xpose.msra.mxu0 0.0
        %591 = vmatprep.subr.mxu0 0.0
        %592 = vmatpush2.xpose.msra.mxu0 0.0
        %593 = vmatprep.subr.mxu0 0.0
        %594 = vmatpush2.xpose.msra.mxu0 0.0
        %595 = vmatprep.subr.mxu0 0.0
        %596 = vmatpush2.xpose.msra.mxu0 0.0
        %597 = vmatprep.subr.mxu0 0.0
        %598 = vmatpush2.xpose.msra.mxu0 0.0
        %599 = vmatprep.subr.mxu0 0.0
        %600 = vmatpush2.xpose.msra.mxu0 0.0
        %601 = vmatprep.subr.mxu0 0.0
        %602 = vmatpush2.xpose.msra.mxu0 0.0
        %603 = vmatprep.subr.mxu0 0.0
        %604 = vmatpush2.xpose.msra.mxu0 0.0
        %605 = vmatprep.subr.mxu0 0.0
        %606 = vmatpush2.xpose.msra.mxu0 0.0
        %607 = vmatprep.subr.mxu0 0.0
        %608 = vmatpush2.xpose.msra.mxu0 0.0
        %609 = vmatprep.subr.mxu0 0.0
        %610 = vmatpush2.xpose.msra.mxu0 0.0
        %611 = vmatprep.mubr.f32.mxu0 0.0
        %612 = vmatmul.mubr.f32.gmra.mxu0 %v546
        %v613 = vpop.f32.mrf.mxu0
        %v614 = vadd.f32 0.0, %v613
        %v615 = vpop.f32.mrf.mxu0
        %616 = vdwg.mxu0
        %v617 = vstv %s359
        %vm618 = vcmp.ge.s32.totalorder %v530, %v617
        %v619 = vsel %vm618, -inf, %v614
        %vm620 = vcmask 60416
        %v621 = vsel %vm620, %v619, -inf
        %622 = vmax.xlane.f32.xlu0 %v621
        %v623 = vpop.xlane.xlu0 %622
        %v624 = vsub.f32 %v619, %v623
        %v625 = vmul.f32 %v624, 1.442695
        %v626 = vpow.pop %v625
        %v627 = vsel %vm620, %v626, 0.0
        %628 = vadd.xlane.f32.xlu0 %v627
        %v629 = vpop.xlane.xlu0 %628
        %v630 = vrcp.pop %v629
        %v631 = vmul.f32 %v629, %v630
        %v632 = vsub.f32 2.0, %v631
        %v633 = vmul.f32 %v630, %v632
        %v634 = vmul.f32 %v626, %v633
        %635 = vst.msk [vmem:[%s345] sm:$0xf] %vm620, %v634
        %vm636 = vcmask 64512
        %v638 = vsel %vm636, %v634, 0
        %640 = vmatprep.subr.mxu0 0.0
        %641 = vmatpush1.msra.mxu0 0.0
        %642 = vmatprep.subr.mxu0 0.0
        %643 = vmatpush1.msra.mxu0 0.0
        %644 = vmatprep.subr.mxu0 0.0
        %645 = vmatpush1.msra.mxu0 0.0
        %646 = vmatprep.subr.mxu0 0.0
        %647 = vmatpush1.msra.mxu0 0.0
        %648 = vmatprep.subr.mxu0 0.0
        %649 = vmatpush1.msra.mxu0 0.0
        %650 = vmatprep.subr.mxu0 0.0
        %651 = vmatpush1.msra.mxu0 0.0
        %652 = vmatprep.subr.mxu0 0.0
        %653 = vmatpush1.msra.mxu0 0.0
        %654 = vmatprep.subr.mxu0 0.0
        %655 = vmatpush1.msra.mxu0 0.0
        %656 = vmatprep.subr.mxu0 0.0
        %657 = vmatpush1.msra.mxu0 0.0
        %658 = vmatprep.subr.mxu0 0.0
        %659 = vmatpush1.msra.mxu0 0.0
        %660 = vmatprep.subr.mxu0 0.0
        %661 = vmatpush1.msra.mxu0 0.0
        %662 = vmatprep.subr.mxu0 0.0
        %663 = vmatpush1.msra.mxu0 0.0
        %664 = vmatprep.subr.mxu0 0.0
        %665 = vmatpush1.msra.mxu0 0.0
        %666 = vmatprep.subr.mxu0 0.0
        %667 = vmatpush1.msra.mxu0 0.0
        %668 = vmatprep.subr.mxu0 0.0
        %669 = vmatpush1.msra.mxu0 0.0
        %670 = vmatprep.subr.mxu0 0.0
        %671 = vmatpush1.msra.mxu0 %v526
        %672 = vmatprep.subr.mxu0 0.0
        %673 = vmatpush2.msra.mxu0 0.0
        %674 = vmatprep.subr.mxu0 0.0
        %675 = vmatpush2.msra.mxu0 0.0
        %676 = vmatprep.subr.mxu0 0.0
        %677 = vmatpush2.msra.mxu0 0.0
        %678 = vmatprep.subr.mxu0 0.0
        %679 = vmatpush2.msra.mxu0 0.0
        %680 = vmatprep.subr.mxu0 0.0
        %681 = vmatpush2.msra.mxu0 0.0
        %682 = vmatprep.subr.mxu0 0.0
        %683 = vmatpush2.msra.mxu0 0.0
        %684 = vmatprep.subr.mxu0 0.0
        %685 = vmatpush2.msra.mxu0 0.0
        %686 = vmatprep.subr.mxu0 0.0
        %687 = vmatpush2.msra.mxu0 0.0
        %688 = vmatprep.subr.mxu0 0.0
        %689 = vmatpush2.msra.mxu0 0.0
        %690 = vmatprep.subr.mxu0 0.0
        %691 = vmatpush2.msra.mxu0 0.0
        %692 = vmatprep.subr.mxu0 0.0
        %693 = vmatpush2.msra.mxu0 0.0
        %694 = vmatprep.subr.mxu0 0.0
        %695 = vmatpush2.msra.mxu0 0.0
        %696 = vmatprep.subr.mxu0 0.0
        %697 = vmatpush2.msra.mxu0 0.0
        %698 = vmatprep.subr.mxu0 0.0
        %699 = vmatpush2.msra.mxu0 0.0
        %700 = vmatprep.subr.mxu0 0.0
        %701 = vmatpush2.msra.mxu0 0.0
        %702 = vmatprep.subr.mxu0 0.0
        %703 = vmatpush2.msra.mxu0 0.0
        %704 = vmatprep.mubr.f32.mxu0 0.0
        %705 = vmatmul.mubr.f32.gmra.mxu0 %v638
        %v706 = vpop.f32.mrf.mxu0
        %v707 = vadd.f32 0.0, %v706
        %v708 = vpop.f32.mrf.mxu0
        %709 = vdwg.mxu0
        %v710 = vsel %vm541, %v707, 0.0
        %vm711 = vcmask 1043456
        %v712 = vsel %vm711, %v710, 0.0
        %v713 = vrot.slane %v712, 4
        %v714 = vadd.f32 %v712, %v713
        %v715 = vrot.slane %v714, 2
        %v716 = vadd.f32 %v714, %v715
        %v717 = vrot.slane %v716, 1
        %v718 = vadd.f32 %v716, %v717
        %v719 = vld [vmem:[%s7] sm:$0xff]
        %v720 = vld [vmem:[%s7 + $0x8] sm:$0xff]
        %v721 = vld [vmem:[%s7 + $0x10] sm:$0xff]
        %v722 = vld [vmem:[%s7 + $0x18] sm:$0xff]
        %v723 = vld [vmem:[%s7 + $0x20] sm:$0xff]
        %v724 = vld [vmem:[%s7 + $0x28] sm:$0xff]
        %v725 = vld [vmem:[%s7 + $0x30] sm:$0xff]
        %v726 = vld [vmem:[%s7 + $0x38] sm:$0xff]
        %v727 = vld [vmem:[%s7 + $0x40] sm:$0xff]
        %v728 = vld [vmem:[%s7 + $0x48] sm:$0xff]
        %v729 = vld [vmem:[%s7 + $0x50] sm:$0xff]
        %v730 = vld [vmem:[%s7 + $0x58] sm:$0xff]
        %v731 = vld [vmem:[%s7 + $0x60] sm:$0xff]
        %v732 = vld [vmem:[%s7 + $0x68] sm:$0xff]
        %v733 = vld [vmem:[%s7 + $0x70] sm:$0xff]
        %v734 = vld [vmem:[%s7 + $0x78] sm:$0xff]
        %v735 = vld [vmem:[%s8] sm:$0x1]
        %736 = vmatprep.subr.mxu0 0.0
        %737 = vmatpush1.msra.mxu0 %v734
        %738 = vmatprep.subr.mxu0 0.0
        %739 = vmatpush1.msra.mxu0 %v733
        %740 = vmatprep.subr.mxu0 0.0
        %741 = vmatpush1.msra.mxu0 %v732
        %742 = vmatprep.subr.mxu0 0.0
        %743 = vmatpush1.msra.mxu0 %v731
        %744 = vmatprep.subr.mxu0 0.0
        %745 = vmatpush1.msra.mxu0 %v730
        %746 = vmatprep.subr.mxu0 0.0
        %747 = vmatpush1.msra.mxu0 %v729
        %748 = vmatprep.subr.mxu0 0.0
        %749 = vmatpush1.msra.mxu0 %v728
        %750 = vmatprep.subr.mxu0 0.0
        %751 = vmatpush1.msra.mxu0 %v727
        %752 = vmatprep.subr.mxu0 0.0
        %753 = vmatpush1.msra.mxu0 %v726
        %754 = vmatprep.subr.mxu0 0.0
        %755 = vmatpush1.msra.mxu0 %v725
        %756 = vmatprep.subr.mxu0 0.0
        %757 = vmatpush1.msra.mxu0 %v724
        %758 = vmatprep.subr.mxu0 0.0
        %759 = vmatpush1.msra.mxu0 %v723
        %760 = vmatprep.subr.mxu0 0.0
        %761 = vmatpush1.msra.mxu0 %v722
        %762 = vmatprep.subr.mxu0 0.0
        %763 = vmatpush1.msra.mxu0 %v721
        %764 = vmatprep.subr.mxu0 0.0
        %765 = vmatpush1.msra.mxu0 %v720
        %766 = vmatprep.subr.mxu0 0.0
        %767 = vmatpush1.msra.mxu0 %v719
        %768 = vmatprep.subr.mxu0 0.0
        %769 = vmatpush2.msra.mxu0 0.0
        %770 = vmatprep.subr.mxu0 0.0
        %771 = vmatpush2.msra.mxu0 0.0
        %772 = vmatprep.subr.mxu0 0.0
        %773 = vmatpush2.msra.mxu0 0.0
        %774 = vmatprep.subr.mxu0 0.0
        %775 = vmatpush2.msra.mxu0 0.0
        %776 = vmatprep.subr.mxu0 0.0
        %777 = vmatpush2.msra.mxu0 0.0
        %778 = vmatprep.subr.mxu0 0.0
        %779 = vmatpush2.msra.mxu0 0.0
        %780 = vmatprep.subr.mxu0 0.0
        %781 = vmatpush2.msra.mxu0 0.0
        %782 = vmatprep.subr.mxu0 0.0
        %783 = vmatpush2.msra.mxu0 0.0
        %784 = vmatprep.subr.mxu0 0.0
        %785 = vmatpush2.msra.mxu0 0.0
        %786 = vmatprep.subr.mxu0 0.0
        %787 = vmatpush2.msra.mxu0 0.0
        %788 = vmatprep.subr.mxu0 0.0
        %789 = vmatpush2.msra.mxu0 0.0
        %790 = vmatprep.subr.mxu0 0.0
        %791 = vmatpush2.msra.mxu0 0.0
        %792 = vmatprep.subr.mxu0 0.0
        %793 = vmatpush2.msra.mxu0 0.0
        %794 = vmatprep.subr.mxu0 0.0
        %795 = vmatpush2.msra.mxu0 0.0
        %796 = vmatprep.subr.mxu0 0.0
        %797 = vmatpush2.msra.mxu0 0.0
        %798 = vmatprep.subr.mxu0 0.0
        %799 = vmatpush2.msra.mxu0 0.0
        %800 = vmatprep.mubr.f32.mxu0 0.0
        %801 = vmatmul.mubr.f32.gmra.mxu0 %v718
        %v802 = vpop.f32.mrf.mxu0
        %v803 = vadd.f32 %v735, %v802
        %v804 = vpop.f32.mrf.mxu0
        %805 = vdwg.mxu0
        %vm806 = vcmask 122880
        %807 = vst.msk [vmem:[%s351] sm:$0x1] %vm806, %v803
        %s808 = sand.u32 %s220, 1
        %s809 = scalar_lea.sflag [#allocation5], %s808
        %s810 = sand.u32 %s220, 1
        %s811 = smul.addr %s810, 4
        %s812 = scalar_lea.vmem [#allocation4], %s811
        %s813 = sand.u32 %s246, 1
        %s814 = scalar_lea.sflag [#allocation7], %s813
        %s815 = sand.u32 %s246, 1
        %s816 = scalar_lea.vmem [#allocation6], %s815
        // Predicated region
        $region53: #{attention_forward.1} parent=51 // pred_check
          %p817 = pneg %p230
        $region54: #{attention_forward.1} parent=51 // pred_check_branch
          %819 = sbr.rel (%p817) target = $region56
        $region55: #{attention_forward.1} parent=51 // pred_region
          %s821 = ssub.s32 64, 64
          %822 = vsyncadd %s809, %s821
          %s823 = smul.addr %s34, 64
          %s824 = scalar_lea.hbm %s9, %s823
          %s826 = sshll.u32 %s812, 4
          %s827 = int_to_ptr.vmem [resolvable:$true] %s826
          %829 = dma.vmem_to_hbm [thread:$0]  %s827, 64, %s824, %s809
        $region56: #{attention_forward.1} parent=51 // pred_fallthru
          _
        // Predicated region
        $region57: #{attention_forward.1} parent=51 // pred_check
          %p830 = pneg %p256
        $region58: #{attention_forward.1} parent=51 // pred_check_branch
          %832 = sbr.rel (%p830) target = $region60
        $region59: #{attention_forward.1} parent=51 // pred_region
          %s834 = ssub.s32 16, 16
          %835 = vsyncadd %s814, %s834
          %s836 = smul.addr %s34, 16
          %s837 = scalar_lea.hbm %s10, %s836
          %s839 = sshll.u32 %s816, 4
          %s840 = int_to_ptr.vmem [resolvable:$true] %s839
          %842 = dma.vmem_to_hbm [thread:$0]  %s840, 16, %s837, %s814
        $region60: #{attention_forward.1} parent=51 // pred_fallthru
          _
      $region52: #{attention_forward.1} parent=5 // pred_fallthru
        _
      %p843 = scmp.le.s32.totalorder 2, %s29
      // Predicated region
      $region61: #{attention_forward.1} parent=5 // pred_check
        %p844 = pneg %p843
      $region62: #{attention_forward.1} parent=5 // pred_check_branch
        %846 = sbr.rel (%p844) target = $region64
      $region63: #{attention_forward.1} parent=5 // pred_region
        %s847 = ssub.s32 %s29, 2
        // Predicated region
        $region65: #{attention_forward.1} parent=63 // pred_check
          %p848 = pneg %p236
        $region66: #{attention_forward.1} parent=63 // pred_check_branch
          %850 = sbr.rel (%p848) target = $region68
        $region67: #{attention_forward.1} parent=63 // pred_region
          %s851 = sand.u32 %s221, 1
          %s852 = scalar_lea.sflag [#allocation5], %s851
          %s853 = sand.u32 %s221, 1
          %s854 = smul.addr %s853, 4
          %s855 = scalar_lea.vmem [#allocation4], %s854
          %856 = dma.done %s852, 64
        $region68: #{attention_forward.1} parent=63 // pred_fallthru
          _
        // Predicated region
        $region69: #{attention_forward.1} parent=63 // pred_check
          %p857 = pneg %p262
        $region70: #{attention_forward.1} parent=63 // pred_check_branch
          %859 = sbr.rel (%p857) target = $region72
        $region71: #{attention_forward.1} parent=63 // pred_region
          %s860 = sand.u32 %s247, 1
          %s861 = scalar_lea.sflag [#allocation7], %s860
          %s862 = sand.u32 %s247, 1
          %s863 = scalar_lea.vmem [#allocation6], %s862
          %864 = dma.done %s861, 16
        $region72: #{attention_forward.1} parent=63 // pred_fallthru
          _
      $region64: #{attention_forward.1} parent=5 // pred_fallthru
        _
    $region6: #{attention_forward.1} parent=1 // loop_footer
      %s33 = sadd.s32 1, %s29
    $region7: #{attention_forward.1} parent=1 // loop_footer_branch
      %28 = sbr.rel target = $region3
    $region8: #{attention_forward.1} parent=1 // loop_exit
      _
    %865 = vsyncpa [#allocation5], 1
    %s866 = scalar_lea.sflag [#allocation5], 1
    %867 = vsyncpa %s866, 1
    %868 = vsyncpa [#allocation7], 1
    %s869 = scalar_lea.sflag [#allocation7], 1
    %870 = vsyncpa %s869, 1

</llo_original>
